<compile_context>
chip_gen: v6e
topology: v6e:2x2x1
jax: 0.10.0
libtpu: 0.0.40
codegen_flags: <defaults>
</compile_context>

<pallas_src>
import jax
import jax.numpy as jnp
from jax.experimental import pallas as pl
from jax.experimental.pallas import tpu as pltpu


def _make_embedding_kernel(pblk, Q, D):
    """Kernel over one (batch_tile, part_chunk) block: Pblk unrolled MXU matmuls."""

    def kernel(x_ref, w_ref, o_ref):
        # x_ref: (TB, pblk*Q)   activations for this batch tile / part chunk
        # w_ref: (pblk, Q, D)   this chunk's codebooks (already transposed)
        # o_ref: (TB, pblk*D)   f32 output
        for p in range(pblk):  # static unroll; slices are 128-lane aligned when Q,D%128==0
            o_ref[:, p * D:(p + 1) * D] = jnp.dot(
                x_ref[:, p * Q:(p + 1) * Q],
                w_ref[p],
                preferred_element_type=jnp.float32,
            ).astype(o_ref.dtype)

    return kernel


def _pick_part_chunk(P, Q, D, w_bytes, chunk_budget=4 << 20, max_parts=16):
    """Largest divisor of P (capped) whose weight chunk fits the budget and keeps the
    flattened lane dims 128-aligned when pblk < P."""
    for pblk in range(min(P, max_parts), 0, -1):
        if P % pblk:
            continue
        if pblk * Q * D * w_bytes > chunk_budget:
            continue
        if pblk < P and ((pblk * Q) % 128 or (pblk * D) % 128):
            continue
        return pblk
    # Fallback: whole table in one chunk (needed when Q/D are not 128-aligned).
    # TODO(synk): add a D-tile grid axis for very large / unaligned codebooks.
    return P


def _pick_batch_tile(B, pblk, Q, D, x_bytes, o_bytes, w_bytes, vmem_budget=24 << 20):
    """Largest batch tile (multiple of 8) whose double-buffered working set fits."""
    b8 = ((B + 7) // 8) * 8
    w_ws = 2 * pblk * Q * D * w_bytes                         # double-buffered weights
    per_row = 2 * (pblk * Q * x_bytes + pblk * D * o_bytes)   # x + out, double-buffered
    cap = max(8, ((max(vmem_budget - w_ws, 0)) // max(per_row, 1)) // 8 * 8)
    if b8 <= cap:
        return b8, b8
    tb = 8
    for cand in (1024, 512, 256, 128, 64, 32, 16, 8):
        if cand <= cap:
            tb = cand
            break
    b_pad = ((B + tb - 1) // tb) * tb
    return tb, b_pad


class EmbeddingONNX:
    """JAX/Pallas port of the PyTorch EmbeddingONNX forward pass."""

    def __init__(self, embedding_n, embedding_dim, part_n, key=None,
                 weight_dtype=jnp.bfloat16):
        assert embedding_n % part_n == 0, "embedding_n must be divisible by part_n"
        self.embedding_n = embedding_n
        self.embedding_dim = embedding_dim
        self.part_n = part_n
        self.quant_n = embedding_n // part_n
        self.weight_dtype = jnp.dtype(weight_dtype)
        # Activations follow the weight dtype on the bf16 path; accumulation is f32.
        self.compute_dtype = (jnp.dtype(jnp.bfloat16)
                              if self.weight_dtype == jnp.dtype(jnp.bfloat16)
                              else jnp.dtype(jnp.float32))

        key = jax.random.PRNGKey(0) if key is None else key
        keys = jax.random.split(key, part_n)
        # PyTorch: weight_i = nn.Parameter(randn(embedding_dim, quant_n)); the kernel
        # consumes weight_i.T stacked as (part_n, quant_n, embedding_dim). The per-part
        # f32 list is NOT retained (avoids doubling the parameter footprint).
        self.w_stacked = jnp.stack(
            [jax.random.normal(keys[i], (embedding_dim, self.quant_n),
                               dtype=jnp.float32).T
             for i in range(part_n)],
            axis=0,
        ).astype(self.weight_dtype)

    def __call__(self, x):
        # x: (B, part_n, quant_n)
        B, P, Q = x.shape
        assert P == self.part_n and Q == self.quant_n, (x.shape, self.part_n, self.quant_n)
        D = self.embedding_dim

        x_bytes = self.compute_dtype.itemsize
        w_bytes = self.weight_dtype.itemsize
        o_bytes = 4  # f32 output

        pblk = _pick_part_chunk(P, Q, D, w_bytes)
        np_chunks = P // pblk
        tb, b_pad = _pick_batch_tile(B, pblk, Q, D, x_bytes, o_bytes, w_bytes)
        nb = b_pad // tb

        # Free, contiguous reshape (no transpose) + optional zero-pad of the batch.
        x2d = x.reshape(B, P * Q).astype(self.compute_dtype)
        if b_pad != B:
            x2d = jnp.pad(x2d, ((0, b_pad - B), (0, 0)))

        if np_chunks > 1:
            # Part-chunk axis outer: weight block index is constant along the inner
            # (batch) axis, so Pallas skips the redundant weight re-DMA.
            grid = (np_chunks, nb)
            x_map = lambda p, b: (b, p)
            w_map = lambda p, b: (p, 0, 0)
            o_map = lambda p, b: (b, p)
        else:
            # Single weight chunk: put the (usually larger) batch axis first so a
            # 2-TensorCore chip (v7x) shards it evenly.
            grid = (nb, np_chunks)
            x_map = lambda b, p: (b, p)
            w_map = lambda b, p: (p, 0, 0)
            o_map = lambda b, p: (b, p)

        kernel = _make_embedding_kernel(pblk, Q, D)

        cost = pl.CostEstimate(
            flops=2 * b_pad * P * Q * D,
            transcendentals=0,
            bytes_accessed=(b_pad * P * Q * x_bytes
                            + P * Q * D * w_bytes
                            + b_pad * P * D * o_bytes),
        )

        out2d = pl.pallas_call(
            kernel,
            out_shape=jax.ShapeDtypeStruct((b_pad, P * D), jnp.float32),
            grid=grid,
            in_specs=[
                pl.BlockSpec((tb, pblk * Q), x_map),       # activations tile
                pl.BlockSpec((pblk, Q, D), w_map),         # one chunk of codebooks
            ],
            out_specs=pl.BlockSpec((tb, pblk * D), o_map),
            compiler_params=pltpu.CompilerParams(
                dimension_semantics=("parallel", "parallel"),
                vmem_limit_bytes=32 * 1024 * 1024,
            ),
            cost_estimate=cost,
        )(x2d, self.w_stacked)

        # Free reshape back to (B, part_n, embedding_dim); drop batch padding.
        return out2d[:B].reshape(B, P, D)


if __name__ == "__main__":
    key = jax.random.PRNGKey(0)
    kw, kx = jax.random.split(key)

    # Small, module-consistent shapes (lane-dense: quant_n and embedding_dim = 128).
    B = 8
    part_n = 4
    embedding_dim = 128
    embedding_n = 512  # -> quant_n = 128

    layer = EmbeddingONNX(embedding_n, embedding_dim, part_n, key=kw)
    x = jax.random.normal(kx, (B, part_n, layer.quant_n), dtype=jnp.float32)

    out = layer(x)
    jax.block_until_ready(out)

    # Reference: concat_i F.linear(x[:, i:i+1, :], weight_i) == per-part einsum, using
    # the same (bf16-stored) parameters / bf16-cast activations as the kernel so the
    # only difference is f32 summation order on the MXU.
    x_cmp = x.astype(layer.compute_dtype).astype(jnp.float32)
    w_cmp = layer.w_stacked.astype(jnp.float32)
    ref = jnp.einsum("bpq,pqd->bpd", x_cmp, w_cmp,
                     precision=jax.lax.Precision.HIGHEST)

    assert out.shape == (B, part_n, embedding_dim), out.shape
    assert out.dtype == jnp.float32, out.dtype
    assert jnp.allclose(out, ref, rtol=1e-3, atol=1e-2), "mismatch vs reference"

    print("KERNEL_OK")
</pallas_src>

<mosaic_0001>
module attributes {stable_mosaic.version = 11 : i64} {
  func.func @kernel(%arg0: i32, %arg1: i32, %arg2: memref<8x512xbf16, #tpu.memory_space<vmem>>, %arg3: memref<4x128x128xbf16, #tpu.memory_space<vmem>>, %arg4: memref<8x512xf32, #tpu.memory_space<vmem>>) attributes {dimension_semantics = [#tpu.dimension_semantics<parallel>, #tpu.dimension_semantics<parallel>], iteration_bounds = array<i64: 1, 1>, scalar_prefetch = 0 : i64, scratch_operands = 0 : i64, tpu.core_type = #tpu.core_type<tc>, window_params = [{transform_indices = @transform_0, window_bounds = array<i64: 8, 512>}, {transform_indices = @transform_1, window_bounds = array<i64: 4, 128, 128>}, {transform_indices = @transform_2, window_bounds = array<i64: 8, 512>}]} {
    %c0 = arith.constant 0 : index
    %c0_0 = arith.constant 0 : index
    %0 = vector.load %arg2[%c0, %c0_0] : memref<8x512xbf16, #tpu.memory_space<vmem>>, vector<8x128xbf16>
    %c0_1 = arith.constant 0 : index
    %c0_2 = arith.constant 0 : index
    %c0_3 = arith.constant 0 : index
    %1 = vector.load %arg3[%c0_1, %c0_2, %c0_3] : memref<4x128x128xbf16, #tpu.memory_space<vmem>>, vector<1x128x128xbf16>
    %2 = vector.shape_cast %1 : vector<1x128x128xbf16> to vector<128x128xbf16>
    %cst = arith.constant dense<0.000000e+00> : vector<8x128xf32>
    %3 = tpu.matmul %0, %2, %cst {dimension_numbers = #tpu.dot_dimension_numbers<[1], [0], [0], [1], [0, 0, 1, 1], [], []>} : vector<8x128xbf16>, vector<128x128xbf16>, vector<8x128xf32> -> vector<8x128xf32>
    %c0_4 = arith.constant 0 : index
    %c0_5 = arith.constant 0 : index
    %4 = vector.load %arg4[%c0_4, %c0_5] : memref<8x512xf32, #tpu.memory_space<vmem>>, vector<8x128xf32>
    tpu.vector_store %arg4[%c0_4, %c0_5], %3 {strides = array<i32>} : memref<8x512xf32, #tpu.memory_space<vmem>>, vector<8x128xf32>,
    %c0_6 = arith.constant 0 : index
    %c128 = arith.constant 128 : index
    %5 = vector.load %arg2[%c0_6, %c128] : memref<8x512xbf16, #tpu.memory_space<vmem>>, vector<8x128xbf16>
    %c1 = arith.constant 1 : index
    %c0_7 = arith.constant 0 : index
    %c0_8 = arith.constant 0 : index
    %6 = vector.load %arg3[%c1, %c0_7, %c0_8] : memref<4x128x128xbf16, #tpu.memory_space<vmem>>, vector<1x128x128xbf16>
    %7 = vector.shape_cast %6 : vector<1x128x128xbf16> to vector<128x128xbf16>
    %cst_9 = arith.constant dense<0.000000e+00> : vector<8x128xf32>
    %8 = tpu.matmul %5, %7, %cst_9 {dimension_numbers = #tpu.dot_dimension_numbers<[1], [0], [0], [1], [0, 0, 1, 1], [], []>} : vector<8x128xbf16>, vector<128x128xbf16>, vector<8x128xf32> -> vector<8x128xf32>
    %c0_10 = arith.constant 0 : index
    %c128_11 = arith.constant 128 : index
    %9 = vector.load %arg4[%c0_10, %c128_11] : memref<8x512xf32, #tpu.memory_space<vmem>>, vector<8x128xf32>
    tpu.vector_store %arg4[%c0_10, %c128_11], %8 {strides = array<i32>} : memref<8x512xf32, #tpu.memory_space<vmem>>, vector<8x128xf32>,
    %c0_12 = arith.constant 0 : index
    %c256 = arith.constant 256 : index
    %10 = vector.load %arg2[%c0_12, %c256] : memref<8x512xbf16, #tpu.memory_space<vmem>>, vector<8x128xbf16>
    %c2 = arith.constant 2 : index
    %c0_13 = arith.constant 0 : index
    %c0_14 = arith.constant 0 : index
    %11 = vector.load %arg3[%c2, %c0_13, %c0_14] : memref<4x128x128xbf16, #tpu.memory_space<vmem>>, vector<1x128x128xbf16>
    %12 = vector.shape_cast %11 : vector<1x128x128xbf16> to vector<128x128xbf16>
    %cst_15 = arith.constant dense<0.000000e+00> : vector<8x128xf32>
    %13 = tpu.matmul %10, %12, %cst_15 {dimension_numbers = #tpu.dot_dimension_numbers<[1], [0], [0], [1], [0, 0, 1, 1], [], []>} : vector<8x128xbf16>, vector<128x128xbf16>, vector<8x128xf32> -> vector<8x128xf32>
    %c0_16 = arith.constant 0 : index
    %c256_17 = arith.constant 256 : index
    %14 = vector.load %arg4[%c0_16, %c256_17] : memref<8x512xf32, #tpu.memory_space<vmem>>, vector<8x128xf32>
    tpu.vector_store %arg4[%c0_16, %c256_17], %13 {strides = array<i32>} : memref<8x512xf32, #tpu.memory_space<vmem>>, vector<8x128xf32>,
    %c0_18 = arith.constant 0 : index
    %c384 = arith.constant 384 : index
    %15 = vector.load %arg2[%c0_18, %c384] : memref<8x512xbf16, #tpu.memory_space<vmem>>, vector<8x128xbf16>
    %c3 = arith.constant 3 : index
    %c0_19 = arith.constant 0 : index
    %c0_20 = arith.constant 0 : index
    %16 = vector.load %arg3[%c3, %c0_19, %c0_20] : memref<4x128x128xbf16, #tpu.memory_space<vmem>>, vector<1x128x128xbf16>
    %17 = vector.shape_cast %16 : vector<1x128x128xbf16> to vector<128x128xbf16>
    %cst_21 = arith.constant dense<0.000000e+00> : vector<8x128xf32>
    %18 = tpu.matmul %15, %17, %cst_21 {dimension_numbers = #tpu.dot_dimension_numbers<[1], [0], [0], [1], [0, 0, 1, 1], [], []>} : vector<8x128xbf16>, vector<128x128xbf16>, vector<8x128xf32> -> vector<8x128xf32>
    %c0_22 = arith.constant 0 : index
    %c384_23 = arith.constant 384 : index
    %19 = vector.load %arg4[%c0_22, %c384_23] : memref<8x512xf32, #tpu.memory_space<vmem>>, vector<8x128xf32>
    tpu.vector_store %arg4[%c0_22, %c384_23], %18 {strides = array<i32>} : memref<8x512xf32, #tpu.memory_space<vmem>>, vector<8x128xf32>,
    return
  }
  func.func @transform_0(%arg0: i32, %arg1: i32) -> (i32, i32) {
    %c0_i32 = arith.constant 0 : i32
    return %arg0, %arg1 : i32, i32
  }
  func.func @transform_1(%arg0: i32, %arg1: i32) -> (i32, i32, i32) {
    %c0_i32 = arith.constant 0 : i32
    %c0_i32_0 = arith.constant 0 : i32
    %c0_i32_1 = arith.constant 0 : i32
    return %arg1, %c0_i32, %c0_i32_0 : i32, i32, i32
  }
  func.func @transform_2(%arg0: i32, %arg1: i32) -> (i32, i32) {
    %c0_i32 = arith.constant 0 : i32
    return %arg0, %arg1 : i32, i32
  }
}

</mosaic_0001>

<llo_original>
// kernel: tpu_custom_call.1
$region0: #{tpu_custom_call.1}
  #allocation0 [shape = 'u32[]', space=smem, size = 0x4, offset = 0x4, fixed_abs, tag = 'smem constant byte address 0x4 - core index']
  #allocation1 [shape = 'u32[144,128]{1,0:T(1,128)}', space=vmem, size = 0x12000, scoped, tag = 'internal scratch']
  %s0 = inlined_call_operand.hbm [shape: bf16[8,512], index: 0, kind: input, shape index: {}]
  %s1 = inlined_call_operand.hbm [shape: bf16[4,128,128], index: 1, kind: input, shape index: {}]
  %s2 = inlined_call_operand.hbm [shape: f32[8,512], index: 2, kind: output, shape index: {}]
  %s3 = sld [smem:[#allocation0]]
  $region26: #{tpu_custom_call.1} parent=0
    _
  %s5 = ssub.s32 1, %s3
  %s6 = scalar_select 0, %s5, %s3
  $region1: #{tpu_custom_call.1} parent=0
    #allocation2 [shape = 'u8[8192]{0}', space=vmem, size = 0x2000, scoped, tag = 'input window, operand 0, single buffered']
    #allocation3 [shape = 's32[1]{0}', space=sflag, size = 0x4, scoped, tag = 'scoped memory for tpu_custom_call.1']
    #allocation4 [shape = 's32[1]{0}', space=sflag, size = 0x4, scoped, tag = 'scoped memory for tpu_custom_call.1']
    #allocation5 [shape = 'u8[131072]{0}', space=vmem, size = 0x20000, scoped, tag = 'input window, operand 1, single buffered']
    #allocation6 [shape = 's32[1]{0}', space=sflag, size = 0x4, scoped, tag = 'scoped memory for tpu_custom_call.1']
    #allocation7 [shape = 'u8[16384]{0}', space=vmem, size = 0x4000, scoped, tag = 'output window, operand 0, single buffered']
    %7 = vsyncpa [#allocation3], 0
    %8 = vsyncpa [#allocation6], 0
    %9 = vsyncpa [#allocation4], 0
    // Predicated region
    $region2: #{tpu_custom_call.1} parent=1 // pred_check
      _
    $region3: #{tpu_custom_call.1} parent=1 // pred_check_branch
      %11 = sbr.rel (0) target = $region5
    $region4: #{tpu_custom_call.1} parent=1 // pred_region
      %s13 = ssub.s32 256, 256
      %14 = vsyncadd [#allocation3], %s13
      %s16 = sshll.u32 [#allocation2], 4
      %s17 = int_to_ptr.vmem [resolvable:$true] %s16
      %19 = dma.hbm_to_vmem [thread:$0]  %s0, 256, %s17, [#allocation3]
    $region5: #{tpu_custom_call.1} parent=1 // pred_fallthru
      _
    // Predicated region
    $region6: #{tpu_custom_call.1} parent=1 // pred_check
      _
    $region7: #{tpu_custom_call.1} parent=1 // pred_check_branch
      %21 = sbr.rel (0) target = $region9
    $region8: #{tpu_custom_call.1} parent=1 // pred_region
      %s23 = ssub.s32 4096, 4096
      %24 = vsyncadd [#allocation6], %s23
      %s25 = sshll.u32 [#allocation5], 4
      %s26 = int_to_ptr.vmem [resolvable:$true] %s25
      %31 = dma.hbm_to_vmem [thread:$0]  %s1, 4096, %s26, [#allocation6], 64, 64, 4
    $region9: #{tpu_custom_call.1} parent=1 // pred_fallthru
      _
    // Predicated region
    $region10: #{tpu_custom_call.1} parent=1 // pred_check
      _
    $region11: #{tpu_custom_call.1} parent=1 // pred_check_branch
      %33 = sbr.rel (0) target = $region13
    $region12: #{tpu_custom_call.1} parent=1 // pred_region
      %34 = dma.done [#allocation3], 256
    $region13: #{tpu_custom_call.1} parent=1 // pred_fallthru
      _
    // Predicated region
    $region14: #{tpu_custom_call.1} parent=1 // pred_check
      _
    $region15: #{tpu_custom_call.1} parent=1 // pred_check_branch
      %36 = sbr.rel (0) target = $region17
    $region16: #{tpu_custom_call.1} parent=1 // pred_region
      %37 = dma.done [#allocation6], 4096
    $region17: #{tpu_custom_call.1} parent=1 // pred_fallthru
      _
    %v39 = vld [vmem:[#allocation2] sm:$0xf]
    %v40 = vld [vmem:[#allocation5] sm:$0xf]
    %v41 = vld [vmem:[#allocation5 + $0x4] sm:$0xf]
    %v42 = vld [vmem:[#allocation5 + $0x8] sm:$0xf]
    %v43 = vld [vmem:[#allocation5 + $0xc] sm:$0xf]
    %v44 = vld [vmem:[#allocation5 + $0x10] sm:$0xf]
    %v45 = vld [vmem:[#allocation5 + $0x14] sm:$0xf]
    %v46 = vld [vmem:[#allocation5 + $0x18] sm:$0xf]
    %v47 = vld [vmem:[#allocation5 + $0x1c] sm:$0xf]
    %v48 = vld [vmem:[#allocation5 + $0x20] sm:$0xf]
    %v49 = vld [vmem:[#allocation5 + $0x24] sm:$0xf]
    %v50 = vld [vmem:[#allocation5 + $0x28] sm:$0xf]
    %v51 = vld [vmem:[#allocation5 + $0x2c] sm:$0xf]
    %v52 = vld [vmem:[#allocation5 + $0x30] sm:$0xf]
    %v53 = vld [vmem:[#allocation5 + $0x34] sm:$0xf]
    %v54 = vld [vmem:[#allocation5 + $0x38] sm:$0xf]
    %v55 = vld [vmem:[#allocation5 + $0x3c] sm:$0xf]
    %v72 = vunpack.c.l.b16 %v40
    %v73 = vunpack.c.l.b16 %v41
    %v74 = vunpack.c.l.b16 %v42
    %v75 = vunpack.c.l.b16 %v43
    %v76 = vunpack.c.l.b16 %v44
    %v77 = vunpack.c.l.b16 %v45
    %v78 = vunpack.c.l.b16 %v46
    %v79 = vunpack.c.l.b16 %v47
    %v80 = vunpack.c.l.b16 %v48
    %v81 = vunpack.c.l.b16 %v49
    %v82 = vunpack.c.l.b16 %v50
    %v83 = vunpack.c.l.b16 %v51
    %v84 = vunpack.c.l.b16 %v52
    %v85 = vunpack.c.l.b16 %v53
    %v86 = vunpack.c.l.b16 %v54
    %v87 = vunpack.c.l.b16 %v55
    %v88 = vpack.c.b16 %v73, %v72
    %v89 = vpack.c.b16 %v75, %v74
    %v90 = vpack.c.b16 %v77, %v76
    %v91 = vpack.c.b16 %v79, %v78
    %v92 = vpack.c.b16 %v81, %v80
    %v93 = vpack.c.b16 %v83, %v82
    %v94 = vpack.c.b16 %v85, %v84
    %v95 = vpack.c.b16 %v87, %v86
    %104 = vmatprep.subr.bf16.mxu0 0
    %105 = vmatpush1.bf16.msra.mxu0 %v95
    %106 = vmatprep.subr.bf16.mxu0 0
    %107 = vmatpush1.bf16.msra.mxu0 %v94
    %108 = vmatprep.subr.bf16.mxu0 0
    %109 = vmatpush1.bf16.msra.mxu0 %v93
    %110 = vmatprep.subr.bf16.mxu0 0
    %111 = vmatpush1.bf16.msra.mxu0 %v92
    %112 = vmatprep.subr.bf16.mxu0 0
    %113 = vmatpush1.bf16.msra.mxu0 %v91
    %114 = vmatprep.subr.bf16.mxu0 0
    %115 = vmatpush1.bf16.msra.mxu0 %v90
    %116 = vmatprep.subr.bf16.mxu0 0
    %117 = vmatpush1.bf16.msra.mxu0 %v89
    %118 = vmatprep.subr.bf16.mxu0 0
    %119 = vmatpush1.bf16.msra.mxu0 %v88
    %120 = vmatprep.subr.bf16.mxu0 0
    %121 = vmatpush2.bf16.msra.mxu0 0
    %122 = vmatprep.subr.bf16.mxu0 0
    %123 = vmatpush2.bf16.msra.mxu0 0
    %124 = vmatprep.subr.bf16.mxu0 0
    %125 = vmatpush2.bf16.msra.mxu0 0
    %126 = vmatprep.subr.bf16.mxu0 0
    %127 = vmatpush2.bf16.msra.mxu0 0
    %128 = vmatprep.subr.bf16.mxu0 0
    %129 = vmatpush2.bf16.msra.mxu0 0
    %130 = vmatprep.subr.bf16.mxu0 0
    %131 = vmatpush2.bf16.msra.mxu0 0
    %132 = vmatprep.subr.bf16.mxu0 0
    %133 = vmatpush2.bf16.msra.mxu0 0
    %134 = vmatprep.subr.bf16.mxu0 0
    %135 = vmatpush2.bf16.msra.mxu0 0
    %136 = vmatprep.mubr.bf16.mxu0 0
    %137 = vmatmul.mubr.bf16.gmra.mxu0 %v39
    %v138 = vpop.f32.mrf.mxu0
    %v139 = vadd.f32 0.0, %v138
    %v140 = vpop.f32.mrf.mxu0
    %v141 = vpop.f32.mrf.mxu0
    %v142 = vpop.f32.mrf.mxu0
    %143 = vdwg.mxu0
    %144 = vst [vmem:[#allocation7] sm:$0xff] %v139
    %v145 = vld [vmem:[#allocation2 + $0x4] sm:$0xf]
    %s146 = scalar_lea.vmem [#allocation5], 64
    %v147 = vld [vmem:[%s146] sm:$0xf]
    %v148 = vld [vmem:[%s146 + $0x4] sm:$0xf]
    %v149 = vld [vmem:[%s146 + $0x8] sm:$0xf]
    %v150 = vld [vmem:[%s146 + $0xc] sm:$0xf]
    %v151 = vld [vmem:[%s146 + $0x10] sm:$0xf]
    %v152 = vld [vmem:[%s146 + $0x14] sm:$0xf]
    %v153 = vld [vmem:[%s146 + $0x18] sm:$0xf]
    %v154 = vld [vmem:[%s146 + $0x1c] sm:$0xf]
    %v155 = vld [vmem:[%s146 + $0x20] sm:$0xf]
    %v156 = vld [vmem:[%s146 + $0x24] sm:$0xf]
    %v157 = vld [vmem:[%s146 + $0x28] sm:$0xf]
    %v158 = vld [vmem:[%s146 + $0x2c] sm:$0xf]
    %v159 = vld [vmem:[%s146 + $0x30] sm:$0xf]
    %v160 = vld [vmem:[%s146 + $0x34] sm:$0xf]
    %v161 = vld [vmem:[%s146 + $0x38] sm:$0xf]
    %v162 = vld [vmem:[%s146 + $0x3c] sm:$0xf]
    %v179 = vunpack.c.l.b16 %v147
    %v180 = vunpack.c.l.b16 %v148
    %v181 = vunpack.c.l.b16 %v149
    %v182 = vunpack.c.l.b16 %v150
    %v183 = vunpack.c.l.b16 %v151
    %v184 = vunpack.c.l.b16 %v152
    %v185 = vunpack.c.l.b16 %v153
    %v186 = vunpack.c.l.b16 %v154
    %v187 = vunpack.c.l.b16 %v155
    %v188 = vunpack.c.l.b16 %v156
    %v189 = vunpack.c.l.b16 %v157
    %v190 = vunpack.c.l.b16 %v158
    %v191 = vunpack.c.l.b16 %v159
    %v192 = vunpack.c.l.b16 %v160
    %v193 = vunpack.c.l.b16 %v161
    %v194 = vunpack.c.l.b16 %v162
    %v195 = vpack.c.b16 %v180, %v179
    %v196 = vpack.c.b16 %v182, %v181
    %v197 = vpack.c.b16 %v184, %v183
    %v198 = vpack.c.b16 %v186, %v185
    %v199 = vpack.c.b16 %v188, %v187
    %v200 = vpack.c.b16 %v190, %v189
    %v201 = vpack.c.b16 %v192, %v191
    %v202 = vpack.c.b16 %v194, %v193
    %211 = vmatprep.subr.bf16.mxu0 0
    %212 = vmatpush1.bf16.msra.mxu0 %v202
    %213 = vmatprep.subr.bf16.mxu0 0
    %214 = vmatpush1.bf16.msra.mxu0 %v201
    %215 = vmatprep.subr.bf16.mxu0 0
    %216 = vmatpush1.bf16.msra.mxu0 %v200
    %217 = vmatprep.subr.bf16.mxu0 0
    %218 = vmatpush1.bf16.msra.mxu0 %v199
    %219 = vmatprep.subr.bf16.mxu0 0
    %220 = vmatpush1.bf16.msra.mxu0 %v198
    %221 = vmatprep.subr.bf16.mxu0 0
    %222 = vmatpush1.bf16.msra.mxu0 %v197
    %223 = vmatprep.subr.bf16.mxu0 0
    %224 = vmatpush1.bf16.msra.mxu0 %v196
    %225 = vmatprep.subr.bf16.mxu0 0
    %226 = vmatpush1.bf16.msra.mxu0 %v195
    %227 = vmatprep.subr.bf16.mxu0 0
    %228 = vmatpush2.bf16.msra.mxu0 0
    %229 = vmatprep.subr.bf16.mxu0 0
    %230 = vmatpush2.bf16.msra.mxu0 0
    %231 = vmatprep.subr.bf16.mxu0 0
    %232 = vmatpush2.bf16.msra.mxu0 0
    %233 = vmatprep.subr.bf16.mxu0 0
    %234 = vmatpush2.bf16.msra.mxu0 0
    %235 = vmatprep.subr.bf16.mxu0 0
    %236 = vmatpush2.bf16.msra.mxu0 0
    %237 = vmatprep.subr.bf16.mxu0 0
    %238 = vmatpush2.bf16.msra.mxu0 0
    %239 = vmatprep.subr.bf16.mxu0 0
    %240 = vmatpush2.bf16.msra.mxu0 0
    %241 = vmatprep.subr.bf16.mxu0 0
    %242 = vmatpush2.bf16.msra.mxu0 0
    %243 = vmatprep.mubr.bf16.mxu0 0
    %244 = vmatmul.mubr.bf16.gmra.mxu0 %v145
    %v245 = vpop.f32.mrf.mxu0
    %v246 = vadd.f32 0.0, %v245
    %v247 = vpop.f32.mrf.mxu0
    %v248 = vpop.f32.mrf.mxu0
    %v249 = vpop.f32.mrf.mxu0
    %250 = vdwg.mxu0
    %251 = vst [vmem:[#allocation7 + $0x8] sm:$0xff] %v246
    %v252 = vld [vmem:[#allocation2 + $0x8] sm:$0xf]
    %s253 = scalar_lea.vmem [#allocation5], 128
    %v254 = vld [vmem:[%s253] sm:$0xf]
    %v255 = vld [vmem:[%s253 + $0x4] sm:$0xf]
    %v256 = vld [vmem:[%s253 + $0x8] sm:$0xf]
    %v257 = vld [vmem:[%s253 + $0xc] sm:$0xf]
    %v258 = vld [vmem:[%s253 + $0x10] sm:$0xf]
    %v259 = vld [vmem:[%s253 + $0x14] sm:$0xf]
    %v260 = vld [vmem:[%s253 + $0x18] sm:$0xf]
    %v261 = vld [vmem:[%s253 + $0x1c] sm:$0xf]
    %v262 = vld [vmem:[%s253 + $0x20] sm:$0xf]
    %v263 = vld [vmem:[%s253 + $0x24] sm:$0xf]
    %v264 = vld [vmem:[%s253 + $0x28] sm:$0xf]
    %v265 = vld [vmem:[%s253 + $0x2c] sm:$0xf]
    %v266 = vld [vmem:[%s253 + $0x30] sm:$0xf]
    %v267 = vld [vmem:[%s253 + $0x34] sm:$0xf]
    %v268 = vld [vmem:[%s253 + $0x38] sm:$0xf]
    %v269 = vld [vmem:[%s253 + $0x3c] sm:$0xf]
    %v286 = vunpack.c.l.b16 %v254
    %v287 = vunpack.c.l.b16 %v255
    %v288 = vunpack.c.l.b16 %v256
    %v289 = vunpack.c.l.b16 %v257
    %v290 = vunpack.c.l.b16 %v258
    %v291 = vunpack.c.l.b16 %v259
    %v292 = vunpack.c.l.b16 %v260
    %v293 = vunpack.c.l.b16 %v261
    %v294 = vunpack.c.l.b16 %v262
    %v295 = vunpack.c.l.b16 %v263
    %v296 = vunpack.c.l.b16 %v264
    %v297 = vunpack.c.l.b16 %v265
    %v298 = vunpack.c.l.b16 %v266
    %v299 = vunpack.c.l.b16 %v267
    %v300 = vunpack.c.l.b16 %v268
    %v301 = vunpack.c.l.b16 %v269
    %v302 = vpack.c.b16 %v287, %v286
    %v303 = vpack.c.b16 %v289, %v288
    %v304 = vpack.c.b16 %v291, %v290
    %v305 = vpack.c.b16 %v293, %v292
    %v306 = vpack.c.b16 %v295, %v294
    %v307 = vpack.c.b16 %v297, %v296
    %v308 = vpack.c.b16 %v299, %v298
    %v309 = vpack.c.b16 %v301, %v300
    %318 = vmatprep.subr.bf16.mxu0 0
    %319 = vmatpush1.bf16.msra.mxu0 %v309
    %320 = vmatprep.subr.bf16.mxu0 0
    %321 = vmatpush1.bf16.msra.mxu0 %v308
    %322 = vmatprep.subr.bf16.mxu0 0
    %323 = vmatpush1.bf16.msra.mxu0 %v307
    %324 = vmatprep.subr.bf16.mxu0 0
    %325 = vmatpush1.bf16.msra.mxu0 %v306
    %326 = vmatprep.subr.bf16.mxu0 0
    %327 = vmatpush1.bf16.msra.mxu0 %v305
    %328 = vmatprep.subr.bf16.mxu0 0
    %329 = vmatpush1.bf16.msra.mxu0 %v304
    %330 = vmatprep.subr.bf16.mxu0 0
    %331 = vmatpush1.bf16.msra.mxu0 %v303
    %332 = vmatprep.subr.bf16.mxu0 0
    %333 = vmatpush1.bf16.msra.mxu0 %v302
    %334 = vmatprep.subr.bf16.mxu0 0
    %335 = vmatpush2.bf16.msra.mxu0 0
    %336 = vmatprep.subr.bf16.mxu0 0
    %337 = vmatpush2.bf16.msra.mxu0 0
    %338 = vmatprep.subr.bf16.mxu0 0
    %339 = vmatpush2.bf16.msra.mxu0 0
    %340 = vmatprep.subr.bf16.mxu0 0
    %341 = vmatpush2.bf16.msra.mxu0 0
    %342 = vmatprep.subr.bf16.mxu0 0
    %343 = vmatpush2.bf16.msra.mxu0 0
    %344 = vmatprep.subr.bf16.mxu0 0
    %345 = vmatpush2.bf16.msra.mxu0 0
    %346 = vmatprep.subr.bf16.mxu0 0
    %347 = vmatpush2.bf16.msra.mxu0 0
    %348 = vmatprep.subr.bf16.mxu0 0
    %349 = vmatpush2.bf16.msra.mxu0 0
    %350 = vmatprep.mubr.bf16.mxu0 0
    %351 = vmatmul.mubr.bf16.gmra.mxu0 %v252
    %v352 = vpop.f32.mrf.mxu0
    %v353 = vadd.f32 0.0, %v352
    %v354 = vpop.f32.mrf.mxu0
    %v355 = vpop.f32.mrf.mxu0
    %v356 = vpop.f32.mrf.mxu0
    %357 = vdwg.mxu0
    %358 = vst [vmem:[#allocation7 + $0x10] sm:$0xff] %v353
    %v359 = vld [vmem:[#allocation2 + $0xc] sm:$0xf]
    %s360 = scalar_lea.vmem [#allocation5], 192
    %v361 = vld [vmem:[%s360] sm:$0xf]
    %v362 = vld [vmem:[%s360 + $0x4] sm:$0xf]
    %v363 = vld [vmem:[%s360 + $0x8] sm:$0xf]
    %v364 = vld [vmem:[%s360 + $0xc] sm:$0xf]
    %v365 = vld [vmem:[%s360 + $0x10] sm:$0xf]
    %v366 = vld [vmem:[%s360 + $0x14] sm:$0xf]
    %v367 = vld [vmem:[%s360 + $0x18] sm:$0xf]
    %v368 = vld [vmem:[%s360 + $0x1c] sm:$0xf]
    %v369 = vld [vmem:[%s360 + $0x20] sm:$0xf]
    %v370 = vld [vmem:[%s360 + $0x24] sm:$0xf]
    %v371 = vld [vmem:[%s360 + $0x28] sm:$0xf]
    %v372 = vld [vmem:[%s360 + $0x2c] sm:$0xf]
    %v373 = vld [vmem:[%s360 + $0x30] sm:$0xf]
    %v374 = vld [vmem:[%s360 + $0x34] sm:$0xf]
    %v375 = vld [vmem:[%s360 + $0x38] sm:$0xf]
    %v376 = vld [vmem:[%s360 + $0x3c] sm:$0xf]
    %v393 = vunpack.c.l.b16 %v361
    %v394 = vunpack.c.l.b16 %v362
    %v395 = vunpack.c.l.b16 %v363
    %v396 = vunpack.c.l.b16 %v364
    %v397 = vunpack.c.l.b16 %v365
    %v398 = vunpack.c.l.b16 %v366
    %v399 = vunpack.c.l.b16 %v367
    %v400 = vunpack.c.l.b16 %v368
    %v401 = vunpack.c.l.b16 %v369
    %v402 = vunpack.c.l.b16 %v370
    %v403 = vunpack.c.l.b16 %v371
    %v404 = vunpack.c.l.b16 %v372
    %v405 = vunpack.c.l.b16 %v373
    %v406 = vunpack.c.l.b16 %v374
    %v407 = vunpack.c.l.b16 %v375
    %v408 = vunpack.c.l.b16 %v376
    %v409 = vpack.c.b16 %v394, %v393
    %v410 = vpack.c.b16 %v396, %v395
    %v411 = vpack.c.b16 %v398, %v397
    %v412 = vpack.c.b16 %v400, %v399
    %v413 = vpack.c.b16 %v402, %v401
    %v414 = vpack.c.b16 %v404, %v403
    %v415 = vpack.c.b16 %v406, %v405
    %v416 = vpack.c.b16 %v408, %v407
    %425 = vmatprep.subr.bf16.mxu0 0
    %426 = vmatpush1.bf16.msra.mxu0 %v416
    %427 = vmatprep.subr.bf16.mxu0 0
    %428 = vmatpush1.bf16.msra.mxu0 %v415
    %429 = vmatprep.subr.bf16.mxu0 0
    %430 = vmatpush1.bf16.msra.mxu0 %v414
    %431 = vmatprep.subr.bf16.mxu0 0
    %432 = vmatpush1.bf16.msra.mxu0 %v413
    %433 = vmatprep.subr.bf16.mxu0 0
    %434 = vmatpush1.bf16.msra.mxu0 %v412
    %435 = vmatprep.subr.bf16.mxu0 0
    %436 = vmatpush1.bf16.msra.mxu0 %v411
    %437 = vmatprep.subr.bf16.mxu0 0
    %438 = vmatpush1.bf16.msra.mxu0 %v410
    %439 = vmatprep.subr.bf16.mxu0 0
    %440 = vmatpush1.bf16.msra.mxu0 %v409
    %441 = vmatprep.subr.bf16.mxu0 0
    %442 = vmatpush2.bf16.msra.mxu0 0
    %443 = vmatprep.subr.bf16.mxu0 0
    %444 = vmatpush2.bf16.msra.mxu0 0
    %445 = vmatprep.subr.bf16.mxu0 0
    %446 = vmatpush2.bf16.msra.mxu0 0
    %447 = vmatprep.subr.bf16.mxu0 0
    %448 = vmatpush2.bf16.msra.mxu0 0
    %449 = vmatprep.subr.bf16.mxu0 0
    %450 = vmatpush2.bf16.msra.mxu0 0
    %451 = vmatprep.subr.bf16.mxu0 0
    %452 = vmatpush2.bf16.msra.mxu0 0
    %453 = vmatprep.subr.bf16.mxu0 0
    %454 = vmatpush2.bf16.msra.mxu0 0
    %455 = vmatprep.subr.bf16.mxu0 0
    %456 = vmatpush2.bf16.msra.mxu0 0
    %457 = vmatprep.mubr.bf16.mxu0 0
    %458 = vmatmul.mubr.bf16.gmra.mxu0 %v359
    %v459 = vpop.f32.mrf.mxu0
    %v460 = vadd.f32 0.0, %v459
    %v461 = vpop.f32.mrf.mxu0
    %v462 = vpop.f32.mrf.mxu0
    %v463 = vpop.f32.mrf.mxu0
    %464 = vdwg.mxu0
    %465 = vst [vmem:[#allocation7 + $0x18] sm:$0xff] %v460
    // Predicated region
    $region18: #{tpu_custom_call.1} parent=1 // pred_check
      _
    $region19: #{tpu_custom_call.1} parent=1 // pred_check_branch
      %467 = sbr.rel (0) target = $region21
    $region20: #{tpu_custom_call.1} parent=1 // pred_region
      %s469 = ssub.s32 512, 512
      %470 = vsyncadd [#allocation4], %s469
      %s472 = sshll.u32 [#allocation7], 4
      %s473 = int_to_ptr.vmem [resolvable:$true] %s472
      %475 = dma.vmem_to_hbm [thread:$0]  %s473, 512, %s2, [#allocation4]
    $region21: #{tpu_custom_call.1} parent=1 // pred_fallthru
      _
    // Predicated region
    $region22: #{tpu_custom_call.1} parent=1 // pred_check
      _
    $region23: #{tpu_custom_call.1} parent=1 // pred_check_branch
      %477 = sbr.rel (0) target = $region25
    $region24: #{tpu_custom_call.1} parent=1 // pred_region
      %478 = dma.done [#allocation4], 512
    $region25: #{tpu_custom_call.1} parent=1 // pred_fallthru
      _
    %479 = vsyncpa [#allocation3], 1
    %480 = vsyncpa [#allocation6], 1
    %481 = vsyncpa [#allocation4], 1

</llo_original>
